<compile_context>
chip_gen: v5e
topology: v5e:2x2
jax: 0.10.0
libtpu: 0.0.40
codegen_flags: <defaults>
</compile_context>

<pallas_src>
import jax
import jax.numpy as jnp
from jax.experimental import pallas as pl
from jax.experimental.pallas import tpu as pltpu


# ----------------------------- Pallas kernel -------------------------------

def _layernorm(x, g, b, eps=1e-5):
    mu = jnp.mean(x, axis=-1, keepdims=True)
    var = jnp.mean((x - mu) * (x - mu), axis=-1, keepdims=True)
    return (x - mu) * jax.lax.rsqrt(var + eps) * g + b


def fused_prompt_plm_kernel(
    x_ref,                    # [1, S, H]  f32  embeddings + soft prompt (batch b)
    mask_ref,                 # [1, 1, S]  f32  attention mask (1 = keep, 0 = pad)
    ln1_g_ref, ln1_b_ref,     # [1, 1, H]  f32
    wqkv_ref,                 # [1, H, 3H] bf16 (1/sqrt(H) folded into Q block)
    wo_ref,                   # [1, H, H]  bf16
    ln2_g_ref, ln2_b_ref,     # [1, 1, H]  f32
    w1_ref, b1_ref,           # [1, H, F]  bf16, [1, 1, F] f32
    w2_ref, b2_ref,           # [1, F, H]  bf16, [1, 1, H] f32
    o_ref,                    # [1, 1, S, H] f32  hidden state after this layer
    acc_ref,                  # VMEM scratch [1, S, H] f32: residual-stream carry
):
    layer = pl.program_id(1)

    # Initialize the VMEM-resident residual stream at the first layer of each
    # batch element (layer axis is the inner, "arbitrary" grid axis).
    @pl.when(layer == 0)
    def _():
        acc_ref[...] = x_ref[...]

    H = x_ref.shape[2]
    x = acc_ref[0]                                   # [S, H] f32
    bias = (1.0 - mask_ref[0]) * -1e9                # [1, S]; broadcasts over queries

    # ---- self-attention (pre-LN), fused QKV projection ----
    h = _layernorm(x, ln1_g_ref[0], ln1_b_ref[0])
    qkv = jnp.dot(h.astype(jnp.bfloat16), wqkv_ref[0],
                  preferred_element_type=jnp.float32)          # [S, 3H]
    q = qkv[:, :H]                                   # attention scale already folded in
    k = qkv[:, H:2 * H]
    v = qkv[:, 2 * H:]

    # q @ k^T without materializing a transpose of k.
    scores = jax.lax.dot_general(
        q.astype(jnp.bfloat16), k.astype(jnp.bfloat16),
        (((1,), (1,)), ((), ())), preferred_element_type=jnp.float32)  # [S, S]
    scores = scores + bias
    m = jnp.max(scores, axis=-1, keepdims=True)
    p = jnp.exp(scores - m)
    p = p * pl.reciprocal(jnp.sum(p, axis=-1, keepdims=True), approx=True)

    attn = jnp.dot(p.astype(jnp.bfloat16), v.astype(jnp.bfloat16),
                   preferred_element_type=jnp.float32)                 # [S, H]
    attn = jnp.dot(attn.astype(jnp.bfloat16), wo_ref[0],
                   preferred_element_type=jnp.float32)
    x = x + attn

    # ---- MLP (pre-LN) ----
    h2 = _layernorm(x, ln2_g_ref[0], ln2_b_ref[0])
    mlp = jnp.dot(h2.astype(jnp.bfloat16), w1_ref[0],
                  preferred_element_type=jnp.float32) + b1_ref[0]
    # NOTE: tanh-approx GELU used both here and in the reference.
    # TODO(synk): PyTorch nn.GELU default is erf-GELU; tanh approx is used for
    # a cheap EUP-friendly lowering.
    mlp = jax.nn.gelu(mlp)
    mlp = jnp.dot(mlp.astype(jnp.bfloat16), w2_ref[0],
                  preferred_element_type=jnp.float32) + b2_ref[0]
    x = x + mlp

    acc_ref[0] = x                                   # carry to next layer
    o_ref[0, 0] = x.astype(o_ref.dtype)              # emit this layer's hidden state


def fused_plm_forward(x, mask, stacked):
    """x: [B, S, H] f32, mask: [B, 1, S] f32, stacked: dict of [L, ...] weights.

    Returns all per-layer hidden states as one array [L, B, S, H]."""
    B, S, H = x.shape
    L = stacked["wqkv"].shape[0]
    F = stacked["w1"].shape[2]

    def wspec(shape):
        return pl.BlockSpec(shape, lambda b, l: (l, 0, 0))

    return pl.pallas_call(
        fused_prompt_plm_kernel,
        out_shape=jax.ShapeDtypeStruct((L, B, S, H), jnp.float32),
        grid_spec=pltpu.PrefetchScalarGridSpec(
            num_scalar_prefetch=0,
            grid=(B, L),                                   # batch outer, layers inner
            in_specs=[
                pl.BlockSpec((1, S, H), lambda b, l: (b, 0, 0)),   # x (fetched per b)
                pl.BlockSpec((1, 1, S), lambda b, l: (b, 0, 0)),   # mask
                wspec((1, 1, H)), wspec((1, 1, H)),                # ln1 gamma/beta
                wspec((1, H, 3 * H)),                              # wqkv (fused)
                wspec((1, H, H)),                                  # wo
                wspec((1, 1, H)), wspec((1, 1, H)),                # ln2 gamma/beta
                wspec((1, H, F)), wspec((1, 1, F)),                # w1, b1
                wspec((1, F, H)), wspec((1, 1, H)),                # w2, b2
            ],
            out_specs=pl.BlockSpec((1, 1, S, H), lambda b, l: (l, b, 0, 0)),
            scratch_shapes=[pltpu.VMEM((1, S, H), jnp.float32)],
        ),
        compiler_params=pltpu.CompilerParams(
            dimension_semantics=("parallel", "arbitrary")),
    )(x, mask,
      stacked["ln1_g"], stacked["ln1_b"],
      stacked["wqkv"], stacked["wo"],
      stacked["ln2_g"], stacked["ln2_b"],
      stacked["w1"], stacked["b1"], stacked["w2"], stacked["b2"])


# ------------------------- parameters & forward ------------------------------

def init_params(key, vocab, hidden, ffn, n_layers, n_prompt):
    ks = jax.random.split(key, 4 + 8 * n_layers)
    i = iter(range(len(ks)))
    scale_e = 0.02
    params = {
        "embed": scale_e * jax.random.normal(ks[next(i)], (vocab, hidden), jnp.float32),
        "soft_prompt": scale_e * jax.random.normal(ks[next(i)], (n_prompt, hidden), jnp.float32),
        "layers": [],
    }
    for _ in range(n_layers):
        lp = {
            "ln1_g": jnp.ones((1, hidden), jnp.float32),
            "ln1_b": jnp.zeros((1, hidden), jnp.float32),
            "wq": scale_e * jax.random.normal(ks[next(i)], (hidden, hidden), jnp.float32),
            "wk": scale_e * jax.random.normal(ks[next(i)], (hidden, hidden), jnp.float32),
            "wv": scale_e * jax.random.normal(ks[next(i)], (hidden, hidden), jnp.float32),
            "wo": scale_e * jax.random.normal(ks[next(i)], (hidden, hidden), jnp.float32),
            "ln2_g": jnp.ones((1, hidden), jnp.float32),
            "ln2_b": jnp.zeros((1, hidden), jnp.float32),
            "w1": scale_e * jax.random.normal(ks[next(i)], (hidden, ffn), jnp.float32),
            "b1": jnp.zeros((1, ffn), jnp.float32),
            "w2": scale_e * jax.random.normal(ks[next(i)], (ffn, hidden), jnp.float32),
            "b2": jnp.zeros((1, hidden), jnp.float32),
        }
        params["layers"].append(lp)
    return params


def stack_layer_params(params):
    """Stack per-layer weights as [L, ...], fuse QKV (+ fold attention scale),
    cast matmul weights to bf16 (f32 accumulation happens in-kernel)."""
    layers = params["layers"]
    H = layers[0]["wq"].shape[0]
    scale = 1.0 / float(H) ** 0.5
    stack = lambda key: jnp.stack([lp[key] for lp in layers])
    return {
        "ln1_g": stack("ln1_g"), "ln1_b": stack("ln1_b"),
        "wqkv": jnp.stack([
            jnp.concatenate([lp["wq"] * scale, lp["wk"], lp["wv"]], axis=1)
            for lp in layers]).astype(jnp.bfloat16),
        "wo": stack("wo").astype(jnp.bfloat16),
        "ln2_g": stack("ln2_g"), "ln2_b": stack("ln2_b"),
        "w1": stack("w1").astype(jnp.bfloat16),
        "b1": stack("b1"),
        "w2": stack("w2").astype(jnp.bfloat16),
        "b2": stack("b2"),
    }


def _process_batch(params, input_ids, attention_mask):
    """template.process_batch: embed tokens, prepend soft prompt, extend mask."""
    B, S = input_ids.shape
    n_prompt, H = params["soft_prompt"].shape
    tok_emb = jnp.take(params["embed"], input_ids, axis=0)              # [B, S, H]
    prompt = jnp.broadcast_to(params["soft_prompt"][None], (B, n_prompt, H))
    x = jnp.concatenate([prompt, tok_emb], axis=1)                      # [B, S', H]
    mask = jnp.concatenate(
        [jnp.ones((B, n_prompt), jnp.float32),
         attention_mask.astype(jnp.float32)], axis=1)[:, None, :]       # [B, 1, S']
    return x, mask


def prompt_model_forward(params, input_ids, attention_mask):
    """
    Mirrors PromptModel.forward:
      1. template.process_batch: embed tokens, prepend soft prompt, extend mask.
      2. plm(**inputs, output_hidden_states=True): fused Pallas transformer.
      3. template.post_processing_outputs: identity -> return hidden states.
    Returns: tuple of hidden states (embeddings + one per layer), each
    [B, n_prompt+S, H].
    """
    x, mask = _process_batch(params, input_ids, attention_mask)
    stacked = stack_layer_params(params)
    layer_hs = fused_plm_forward(x, mask, stacked)                      # [L, B, S', H]
    # template.post_processing_outputs: identity
    return (x,) + tuple(layer_hs[l] for l in range(layer_hs.shape[0]))


# ----------------------------- pure-JAX reference ----------------------------

def reference_forward(params, input_ids, attention_mask):
    x, mask = _process_batch(params, input_ids, attention_mask)
    bias = (1.0 - mask) * -1e9                                          # [B, 1, S']
    hs = [x]
    H = params["soft_prompt"].shape[1]
    for lp in params["layers"]:
        h = _layernorm(x, lp["ln1_g"], lp["ln1_b"])
        q = h @ lp["wq"] / jnp.sqrt(float(H))
        k = h @ lp["wk"]
        v = h @ lp["wv"]
        s = jnp.einsum("bqd,bkd->bqk", q, k) + bias
        p = jax.nn.softmax(s, axis=-1)
        attn = jnp.einsum("bqk,bkd->bqd", p, v) @ lp["wo"]
        x = x + attn
        h2 = _layernorm(x, lp["ln2_g"], lp["ln2_b"])
        mlp = jax.nn.gelu(h2 @ lp["w1"] + lp["b1"]) @ lp["w2"] + lp["b2"]
        x = x + mlp
        hs.append(x)
    return tuple(hs)


# --------------------------------- main -------------------------------------

if __name__ == "__main__":
    key = jax.random.PRNGKey(0)

    # small shapes implied by the forward: a batch of tokenized prompts
    B, S = 2, 12           # batch, raw sequence length (n_prompt + S = 16 -> sublane aligned)
    VOCAB = 64
    HIDDEN = 32
    FFN = 64
    N_LAYERS = 2
    N_PROMPT = 4           # soft-prompt tokens prepended by the template

    k_param, k_ids = jax.random.split(key)
    params = init_params(k_param, VOCAB, HIDDEN, FFN, N_LAYERS, N_PROMPT)

    input_ids = jax.random.randint(k_ids, (B, S), 0, VOCAB, dtype=jnp.int32)
    attention_mask = jnp.ones((B, S), jnp.int32)
    attention_mask = attention_mask.at[1, S - 3:].set(0)   # some padding in batch 1

    fwd = jax.jit(prompt_model_forward)
    outputs = jax.block_until_ready(fwd(params, input_ids, attention_mask))

    final = outputs[-1]
    assert len(outputs) == N_LAYERS + 1
    assert final.shape == (B, N_PROMPT + S, HIDDEN)
    assert bool(jnp.all(jnp.isfinite(final)))

    # Loose correctness check vs. pure-JAX f32 reference (kernel uses bf16
    # matmul operands + approx reciprocal, so tolerance is coarse).
    ref = reference_forward(params, input_ids, attention_mask)
    max_err = max(float(jnp.max(jnp.abs(a - b))) for a, b in zip(outputs, ref))
    assert max_err < 2e-2, f"max abs error vs reference too large: {max_err}"

    print("KERNEL_OK")
</pallas_src>

<mosaic_0001>
module attributes {stable_mosaic.version = 11 : i64} {
  func.func @fused_prompt_plm_kernel(%arg0: i32, %arg1: i32, %arg2: memref<1x16x32xf32, #tpu.memory_space<vmem>>, %arg3: memref<1x1x16xf32, #tpu.memory_space<vmem>>, %arg4: memref<1x1x32xf32, #tpu.memory_space<vmem>>, %arg5: memref<1x1x32xf32, #tpu.memory_space<vmem>>, %arg6: memref<1x32x96xbf16, #tpu.memory_space<vmem>>, %arg7: memref<1x32x32xbf16, #tpu.memory_space<vmem>>, %arg8: memref<1x1x32xf32, #tpu.memory_space<vmem>>, %arg9: memref<1x1x32xf32, #tpu.memory_space<vmem>>, %arg10: memref<1x32x64xbf16, #tpu.memory_space<vmem>>, %arg11: memref<1x1x64xf32, #tpu.memory_space<vmem>>, %arg12: memref<1x64x32xbf16, #tpu.memory_space<vmem>>, %arg13: memref<1x1x32xf32, #tpu.memory_space<vmem>>, %arg14: memref<1x1x16x32xf32, #tpu.memory_space<vmem>>, %arg15: memref<1x16x32xf32, #tpu.memory_space<vmem>>) attributes {dimension_semantics = [#tpu.dimension_semantics<parallel>, #tpu.dimension_semantics<arbitrary>], iteration_bounds = array<i64: 2, 2>, scalar_prefetch = 0 : i64, scratch_operands = 1 : i64, tpu.core_type = #tpu.core_type<tc>, window_params = [{transform_indices = @transform_0, window_bounds = array<i64: 1, 16, 32>}, {transform_indices = @transform_1, window_bounds = array<i64: 1, 1, 16>}, {transform_indices = @transform_2, window_bounds = array<i64: 1, 1, 32>}, {transform_indices = @transform_3, window_bounds = array<i64: 1, 1, 32>}, {transform_indices = @transform_4, window_bounds = array<i64: 1, 32, 96>}, {transform_indices = @transform_5, window_bounds = array<i64: 1, 32, 32>}, {transform_indices = @transform_6, window_bounds = array<i64: 1, 1, 32>}, {transform_indices = @transform_7, window_bounds = array<i64: 1, 1, 32>}, {transform_indices = @transform_8, window_bounds = array<i64: 1, 32, 64>}, {transform_indices = @transform_9, window_bounds = array<i64: 1, 1, 64>}, {transform_indices = @transform_10, window_bounds = array<i64: 1, 64, 32>}, {transform_indices = @transform_11, window_bounds = array<i64: 1, 1, 32>}, {transform_indices = @transform_12, window_bounds = array<i64: 1, 1, 16, 32>}]} {
    %c0_i32 = arith.constant 0 : i32
    %0 = arith.cmpi eq, %arg1, %c0_i32 : i32
    %1 = arith.extui %0 : i1 to i32
    %c0_i32_0 = arith.constant 0 : i32
    %2 = arith.cmpi ne, %1, %c0_i32_0 : i32
    scf.if %2 {
      %c0_66 = arith.constant 0 : index
      %c0_67 = arith.constant 0 : index
      %c0_68 = arith.constant 0 : index
      %133 = vector.load %arg2[%c0_66, %c0_67, %c0_68] : memref<1x16x32xf32, #tpu.memory_space<vmem>>, vector<1x16x32xf32>
      %c0_69 = arith.constant 0 : index
      %c0_70 = arith.constant 0 : index
      %c0_71 = arith.constant 0 : index
      %134 = vector.load %arg15[%c0_69, %c0_70, %c0_71] : memref<1x16x32xf32, #tpu.memory_space<vmem>>, vector<1x16x32xf32>
      tpu.vector_store %arg15[%c0_69, %c0_70, %c0_71], %133 {strides = array<i32>} : memref<1x16x32xf32, #tpu.memory_space<vmem>>, vector<1x16x32xf32>,
    } else {
    }
    %c0 = arith.constant 0 : index
    %c0_1 = arith.constant 0 : index
    %c0_2 = arith.constant 0 : index
    %3 = vector.load %arg15[%c0, %c0_1, %c0_2] : memref<1x16x32xf32, #tpu.memory_space<vmem>>, vector<1x16x32xf32>
    %4 = vector.shape_cast %3 : vector<1x16x32xf32> to vector<16x32xf32>
    %c0_3 = arith.constant 0 : index
    %c0_4 = arith.constant 0 : index
    %c0_5 = arith.constant 0 : index
    %5 = vector.load %arg3[%c0_3, %c0_4, %c0_5] : memref<1x1x16xf32, #tpu.memory_space<vmem>>, vector<1x1x16xf32>
    %6 = vector.shape_cast %5 : vector<1x1x16xf32> to vector<1x16xf32>
    %cst = arith.constant 1.000000e+00 : f32
    %7 = vector.broadcast %cst : f32 to vector<1x16xf32>
    %8 = arith.subf %7, %6 : vector<1x16xf32>
    %cst_6 = arith.constant -1.000000e+09 : f32
    %9 = vector.broadcast %cst_6 : f32 to vector<1x16xf32>
    %10 = arith.mulf %8, %9 : vector<1x16xf32>
    %c0_7 = arith.constant 0 : index
    %c0_8 = arith.constant 0 : index
    %c0_9 = arith.constant 0 : index
    %11 = vector.load %arg4[%c0_7, %c0_8, %c0_9] : memref<1x1x32xf32, #tpu.memory_space<vmem>>, vector<1x1x32xf32>
    %12 = vector.shape_cast %11 : vector<1x1x32xf32> to vector<1x32xf32>
    %c0_10 = arith.constant 0 : index
    %c0_11 = arith.constant 0 : index
    %c0_12 = arith.constant 0 : index
    %13 = vector.load %arg5[%c0_10, %c0_11, %c0_12] : memref<1x1x32xf32, #tpu.memory_space<vmem>>, vector<1x1x32xf32>
    %14 = vector.shape_cast %13 : vector<1x1x32xf32> to vector<1x32xf32>
    %cst_13 = arith.constant dense<0.000000e+00> : vector<16xf32>
    %15 = vector.multi_reduction <add>, %4, %cst_13 [1] : vector<16x32xf32> to vector<16xf32>
    %16 = vector.shape_cast %15 : vector<16xf32> to vector<16x1xf32>
    %cst_14 = arith.constant 3.200000e+01 : f32
    %17 = vector.broadcast %cst_14 : f32 to vector<16x1xf32>
    %18 = arith.divf %16, %17 : vector<16x1xf32>
    %19 = vector.broadcast %18 : vector<16x1xf32> to vector<16x32xf32>
    %20 = arith.subf %4, %19 : vector<16x32xf32>
    %21 = vector.broadcast %18 : vector<16x1xf32> to vector<16x32xf32>
    %22 = arith.subf %4, %21 : vector<16x32xf32>
    %23 = arith.mulf %20, %22 : vector<16x32xf32>
    %cst_15 = arith.constant dense<0.000000e+00> : vector<16xf32>
    %24 = vector.multi_reduction <add>, %23, %cst_15 [1] : vector<16x32xf32> to vector<16xf32>
    %25 = vector.shape_cast %24 : vector<16xf32> to vector<16x1xf32>
    %cst_16 = arith.constant 3.200000e+01 : f32
    %26 = vector.broadcast %cst_16 : f32 to vector<16x1xf32>
    %27 = arith.divf %25, %26 : vector<16x1xf32>
    %28 = vector.broadcast %18 : vector<16x1xf32> to vector<16x32xf32>
    %29 = arith.subf %4, %28 : vector<16x32xf32>
    %cst_17 = arith.constant 9.99999974E-6 : f32
    %30 = vector.broadcast %cst_17 : f32 to vector<16x1xf32>
    %31 = arith.addf %27, %30 : vector<16x1xf32>
    %32 = math.rsqrt %31 : vector<16x1xf32>
    %33 = vector.broadcast %32 : vector<16x1xf32> to vector<16x32xf32>
    %34 = arith.mulf %29, %33 : vector<16x32xf32>
    %35 = vector.broadcast %12 : vector<1x32xf32> to vector<16x32xf32>
    %36 = arith.mulf %34, %35 : vector<16x32xf32>
    %37 = vector.broadcast %14 : vector<1x32xf32> to vector<16x32xf32>
    %38 = arith.addf %36, %37 : vector<16x32xf32>
    %39 = arith.truncf %38 : vector<16x32xf32> to vector<16x32xbf16>
    %c0_18 = arith.constant 0 : index
    %c0_19 = arith.constant 0 : index
    %c0_20 = arith.constant 0 : index
    %40 = vector.load %arg6[%c0_18, %c0_19, %c0_20] : memref<1x32x96xbf16, #tpu.memory_space<vmem>>, vector<1x32x96xbf16>
    %41 = vector.shape_cast %40 : vector<1x32x96xbf16> to vector<32x96xbf16>
    %cst_21 = arith.constant dense<0.000000e+00> : vector<16x96xf32>
    %42 = tpu.matmul %39, %41, %cst_21 {dimension_numbers = #tpu.dot_dimension_numbers<[1], [0], [0], [1], [0, 0, 1, 1], [], []>} : vector<16x32xbf16>, vector<32x96xbf16>, vector<16x96xf32> -> vector<16x96xf32>
    %43 = vector.extract_strided_slice %42 {offsets = [0, 0], sizes = [16, 32], strides = [1, 1]} : vector<16x96xf32> to vector<16x32xf32>
    %44 = vector.extract_strided_slice %42 {offsets = [0, 32], sizes = [16, 32], strides = [1, 1]} : vector<16x96xf32> to vector<16x32xf32>
    %45 = vector.extract_strided_slice %42 {offsets = [0, 64], sizes = [16, 32], strides = [1, 1]} : vector<16x96xf32> to vector<16x32xf32>
    %46 = arith.truncf %43 : vector<16x32xf32> to vector<16x32xbf16>
    %47 = arith.truncf %44 : vector<16x32xf32> to vector<16x32xbf16>
    %cst_22 = arith.constant dense<0.000000e+00> : vector<16x16xf32>
    %48 = tpu.matmul %46, %47, %cst_22 {dimension_numbers = #tpu.dot_dimension_numbers<[1], [1], [0], [0], [0, 0, 1, 0], [], []>} : vector<16x32xbf16>, vector<16x32xbf16>, vector<16x16xf32> -> vector<16x16xf32>
    %49 = vector.broadcast %10 : vector<1x16xf32> to vector<16x16xf32>
    %50 = arith.addf %48, %49 : vector<16x16xf32>
    %cst_23 = arith.constant dense<0xFF800000> : vector<16xf32>
    %51 = vector.multi_reduction <maximumf>, %50, %cst_23 [1] : vector<16x16xf32> to vector<16xf32>
    %52 = vector.shape_cast %51 : vector<16xf32> to vector<16x1xf32>
    %53 = vector.broadcast %52 : vector<16x1xf32> to vector<16x16xf32>
    %54 = arith.subf %50, %53 : vector<16x16xf32>
    %55 = math.exp %54 : vector<16x16xf32>
    %cst_24 = arith.constant dense<0.000000e+00> : vector<16xf32>
    %56 = vector.multi_reduction <add>, %55, %cst_24 [1] : vector<16x16xf32> to vector<16xf32>
    %57 = vector.shape_cast %56 : vector<16xf32> to vector<16x1xf32>
    %58 = tpu.reciprocal %57 {approx = true} : vector<16x1xf32> -> vector<16x1xf32>
    %59 = vector.broadcast %58 : vector<16x1xf32> to vector<16x16xf32>
    %60 = arith.mulf %55, %59 : vector<16x16xf32>
    %61 = arith.truncf %60 : vector<16x16xf32> to vector<16x16xbf16>
    %62 = arith.truncf %45 : vector<16x32xf32> to vector<16x32xbf16>
    %cst_25 = arith.constant dense<0.000000e+00> : vector<16x32xf32>
    %63 = tpu.matmul %61, %62, %cst_25 {dimension_numbers = #tpu.dot_dimension_numbers<[1], [0], [0], [1], [0, 0, 1, 1], [], []>} : vector<16x16xbf16>, vector<16x32xbf16>, vector<16x32xf32> -> vector<16x32xf32>
    %64 = arith.truncf %63 : vector<16x32xf32> to vector<16x32xbf16>
    %c0_26 = arith.constant 0 : index
    %c0_27 = arith.constant 0 : index
    %c0_28 = arith.constant 0 : index
    %65 = vector.load %arg7[%c0_26, %c0_27, %c0_28] : memref<1x32x32xbf16, #tpu.memory_space<vmem>>, vector<1x32x32xbf16>
    %66 = vector.shape_cast %65 : vector<1x32x32xbf16> to vector<32x32xbf16>
    %cst_29 = arith.constant dense<0.000000e+00> : vector<16x32xf32>
    %67 = tpu.matmul %64, %66, %cst_29 {dimension_numbers = #tpu.dot_dimension_numbers<[1], [0], [0], [1], [0, 0, 1, 1], [], []>} : vector<16x32xbf16>, vector<32x32xbf16>, vector<16x32xf32> -> vector<16x32xf32>
    %68 = arith.addf %4, %67 : vector<16x32xf32>
    %c0_30 = arith.constant 0 : index
    %c0_31 = arith.constant 0 : index
    %c0_32 = arith.constant 0 : index
    %69 = vector.load %arg8[%c0_30, %c0_31, %c0_32] : memref<1x1x32xf32, #tpu.memory_space<vmem>>, vector<1x1x32xf32>
    %70 = vector.shape_cast %69 : vector<1x1x32xf32> to vector<1x32xf32>
    %c0_33 = arith.constant 0 : index
    %c0_34 = arith.constant 0 : index
    %c0_35 = arith.constant 0 : index
    %71 = vector.load %arg9[%c0_33, %c0_34, %c0_35] : memref<1x1x32xf32, #tpu.memory_space<vmem>>, vector<1x1x32xf32>
    %72 = vector.shape_cast %71 : vector<1x1x32xf32> to vector<1x32xf32>
    %cst_36 = arith.constant dense<0.000000e+00> : vector<16xf32>
    %73 = vector.multi_reduction <add>, %68, %cst_36 [1] : vector<16x32xf32> to vector<16xf32>
    %74 = vector.shape_cast %73 : vector<16xf32> to vector<16x1xf32>
    %cst_37 = arith.constant 3.200000e+01 : f32
    %75 = vector.broadcast %cst_37 : f32 to vector<16x1xf32>
    %76 = arith.divf %74, %75 : vector<16x1xf32>
    %77 = vector.broadcast %76 : vector<16x1xf32> to vector<16x32xf32>
    %78 = arith.subf %68, %77 : vector<16x32xf32>
    %79 = vector.broadcast %76 : vector<16x1xf32> to vector<16x32xf32>
    %80 = arith.subf %68, %79 : vector<16x32xf32>
    %81 = arith.mulf %78, %80 : vector<16x32xf32>
    %cst_38 = arith.constant dense<0.000000e+00> : vector<16xf32>
    %82 = vector.multi_reduction <add>, %81, %cst_38 [1] : vector<16x32xf32> to vector<16xf32>
    %83 = vector.shape_cast %82 : vector<16xf32> to vector<16x1xf32>
    %cst_39 = arith.constant 3.200000e+01 : f32
    %84 = vector.broadcast %cst_39 : f32 to vector<16x1xf32>
    %85 = arith.divf %83, %84 : vector<16x1xf32>
    %86 = vector.broadcast %76 : vector<16x1xf32> to vector<16x32xf32>
    %87 = arith.subf %68, %86 : vector<16x32xf32>
    %cst_40 = arith.constant 9.99999974E-6 : f32
    %88 = vector.broadcast %cst_40 : f32 to vector<16x1xf32>
    %89 = arith.addf %85, %88 : vector<16x1xf32>
    %90 = math.rsqrt %89 : vector<16x1xf32>
    %91 = vector.broadcast %90 : vector<16x1xf32> to vector<16x32xf32>
    %92 = arith.mulf %87, %91 : vector<16x32xf32>
    %93 = vector.broadcast %70 : vector<1x32xf32> to vector<16x32xf32>
    %94 = arith.mulf %92, %93 : vector<16x32xf32>
    %95 = vector.broadcast %72 : vector<1x32xf32> to vector<16x32xf32>
    %96 = arith.addf %94, %95 : vector<16x32xf32>
    %97 = arith.truncf %96 : vector<16x32xf32> to vector<16x32xbf16>
    %c0_41 = arith.constant 0 : index
    %c0_42 = arith.constant 0 : index
    %c0_43 = arith.constant 0 : index
    %98 = vector.load %arg10[%c0_41, %c0_42, %c0_43] : memref<1x32x64xbf16, #tpu.memory_space<vmem>>, vector<1x32x64xbf16>
    %99 = vector.shape_cast %98 : vector<1x32x64xbf16> to vector<32x64xbf16>
    %cst_44 = arith.constant dense<0.000000e+00> : vector<16x64xf32>
    %100 = tpu.matmul %97, %99, %cst_44 {dimension_numbers = #tpu.dot_dimension_numbers<[1], [0], [0], [1], [0, 0, 1, 1], [], []>} : vector<16x32xbf16>, vector<32x64xbf16>, vector<16x64xf32> -> vector<16x64xf32>
    %c0_45 = arith.constant 0 : index
    %c0_46 = arith.constant 0 : index
    %c0_47 = arith.constant 0 : index
    %101 = vector.load %arg11[%c0_45, %c0_46, %c0_47] : memref<1x1x64xf32, #tpu.memory_space<vmem>>, vector<1x1x64xf32>
    %102 = vector.shape_cast %101 : vector<1x1x64xf32> to vector<1x64xf32>
    %103 = vector.broadcast %102 : vector<1x64xf32> to vector<16x64xf32>
    %104 = arith.addf %100, %103 : vector<16x64xf32>
    %105 = arith.mulf %104, %104 : vector<16x64xf32>
    %106 = arith.mulf %104, %105 : vector<16x64xf32>
    %cst_48 = arith.constant 4.471500e-02 : f32
    %107 = vector.broadcast %cst_48 : f32 to vector<16x64xf32>
    %108 = arith.mulf %107, %106 : vector<16x64xf32>
    %109 = arith.addf %104, %108 : vector<16x64xf32>
    %cst_49 = arith.constant 0.797884583 : f32
    %110 = vector.broadcast %cst_49 : f32 to vector<16x64xf32>
    %111 = arith.mulf %110, %109 : vector<16x64xf32>
    %112 = math.tanh %111 : vector<16x64xf32>
    %cst_50 = arith.constant 1.000000e+00 : f32
    %113 = vector.broadcast %cst_50 : f32 to vector<16x64xf32>
    %114 = arith.addf %113, %112 : vector<16x64xf32>
    %cst_51 = arith.constant 5.000000e-01 : f32
    %115 = vector.broadcast %cst_51 : f32 to vector<16x64xf32>
    %116 = arith.mulf %115, %114 : vector<16x64xf32>
    %117 = arith.mulf %104, %116 : vector<16x64xf32>
    %118 = arith.truncf %117 : vector<16x64xf32> to vector<16x64xbf16>
    %c0_52 = arith.constant 0 : index
    %c0_53 = arith.constant 0 : index
    %c0_54 = arith.constant 0 : index
    %119 = vector.load %arg12[%c0_52, %c0_53, %c0_54] : memref<1x64x32xbf16, #tpu.memory_space<vmem>>, vector<1x64x32xbf16>
    %120 = vector.shape_cast %119 : vector<1x64x32xbf16> to vector<64x32xbf16>
    %cst_55 = arith.constant dense<0.000000e+00> : vector<16x32xf32>
    %121 = tpu.matmul %118, %120, %cst_55 {dimension_numbers = #tpu.dot_dimension_numbers<[1], [0], [0], [1], [0, 0, 1, 1], [], []>} : vector<16x64xbf16>, vector<64x32xbf16>, vector<16x32xf32> -> vector<16x32xf32>
    %c0_56 = arith.constant 0 : index
    %c0_57 = arith.constant 0 : index
    %c0_58 = arith.constant 0 : index
    %122 = vector.load %arg13[%c0_56, %c0_57, %c0_58] : memref<1x1x32xf32, #tpu.memory_space<vmem>>, vector<1x1x32xf32>
    %123 = vector.shape_cast %122 : vector<1x1x32xf32> to vector<1x32xf32>
    %124 = vector.broadcast %123 : vector<1x32xf32> to vector<16x32xf32>
    %125 = arith.addf %121, %124 : vector<16x32xf32>
    %126 = arith.addf %68, %125 : vector<16x32xf32>
    %c0_59 = arith.constant 0 : index
    %c0_60 = arith.constant 0 : index
    %c0_61 = arith.constant 0 : index
    %127 = vector.load %arg15[%c0_59, %c0_60, %c0_61] : memref<1x16x32xf32, #tpu.memory_space<vmem>>, vector<1x16x32xf32>
    %128 = vector.shape_cast %127 : vector<1x16x32xf32> to vector<16x32xf32>
    %129 = vector.shape_cast %126 : vector<16x32xf32> to vector<1x16x32xf32>
    tpu.vector_store %arg15[%c0_59, %c0_60, %c0_61], %129 {strides = array<i32>} : memref<1x16x32xf32, #tpu.memory_space<vmem>>, vector<1x16x32xf32>,
    %c0_62 = arith.constant 0 : index
    %c0_63 = arith.constant 0 : index
    %c0_64 = arith.constant 0 : index
    %c0_65 = arith.constant 0 : index
    %130 = vector.load %arg14[%c0_62, %c0_63, %c0_64, %c0_65] : memref<1x1x16x32xf32, #tpu.memory_space<vmem>>, vector<1x1x16x32xf32>
    %131 = vector.shape_cast %130 : vector<1x1x16x32xf32> to vector<16x32xf32>
    %132 = vector.shape_cast %126 : vector<16x32xf32> to vector<1x1x16x32xf32>
    tpu.vector_store %arg14[%c0_62, %c0_63, %c0_64, %c0_65], %132 {strides = array<i32>} : memref<1x1x16x32xf32, #tpu.memory_space<vmem>>, vector<1x1x16x32xf32>,
    return
  }
  func.func @transform_0(%arg0: i32, %arg1: i32) -> (i32, i32, i32) {
    %c0_i32 = arith.constant 0 : i32
    %c0_i32_0 = arith.constant 0 : i32
    %c0_i32_1 = arith.constant 0 : i32
    return %arg0, %c0_i32, %c0_i32_0 : i32, i32, i32
  }
  func.func @transform_1(%arg0: i32, %arg1: i32) -> (i32, i32, i32) {
    %c0_i32 = arith.constant 0 : i32
    %c0_i32_0 = arith.constant 0 : i32
    %c0_i32_1 = arith.constant 0 : i32
    return %arg0, %c0_i32, %c0_i32_0 : i32, i32, i32
  }
  func.func @transform_2(%arg0: i32, %arg1: i32) -> (i32, i32, i32) {
    %c0_i32 = arith.constant 0 : i32
    %c0_i32_0 = arith.constant 0 : i32
    %c0_i32_1 = arith.constant 0 : i32
    return %arg1, %c0_i32, %c0_i32_0 : i32, i32, i32
  }
  func.func @transform_3(%arg0: i32, %arg1: i32) -> (i32, i32, i32) {
    %c0_i32 = arith.constant 0 : i32
    %c0_i32_0 = arith.constant 0 : i32
    %c0_i32_1 = arith.constant 0 : i32
    return %arg1, %c0_i32, %c0_i32_0 : i32, i32, i32
  }
  func.func @transform_4(%arg0: i32, %arg1: i32) -> (i32, i32, i32) {
    %c0_i32 = arith.constant 0 : i32
    %c0_i32_0 = arith.constant 0 : i32
    %c0_i32_1 = arith.constant 0 : i32
    return %arg1, %c0_i32, %c0_i32_0 : i32, i32, i32
  }
  func.func @transform_5(%arg0: i32, %arg1: i32) -> (i32, i32, i32) {
    %c0_i32 = arith.constant 0 : i32
    %c0_i32_0 = arith.constant 0 : i32
    %c0_i32_1 = arith.constant 0 : i32
    return %arg1, %c0_i32, %c0_i32_0 : i32, i32, i32
  }
  func.func @transform_6(%arg0: i32, %arg1: i32) -> (i32, i32, i32) {
    %c0_i32 = arith.constant 0 : i32
    %c0_i32_0 = arith.constant 0 : i32
    %c0_i32_1 = arith.constant 0 : i32
    return %arg1, %c0_i32, %c0_i32_0 : i32, i32, i32
  }
  func.func @transform_7(%arg0: i32, %arg1: i32) -> (i32, i32, i32) {
    %c0_i32 = arith.constant 0 : i32
    %c0_i32_0 = arith.constant 0 : i32
    %c0_i32_1 = arith.constant 0 : i32
    return %arg1, %c0_i32, %c0_i32_0 : i32, i32, i32
  }
  func.func @transform_8(%arg0: i32, %arg1: i32) -> (i32, i32, i32) {
    %c0_i32 = arith.constant 0 : i32
    %c0_i32_0 = arith.constant 0 : i32
    %c0_i32_1 = arith.constant 0 : i32
    return %arg1, %c0_i32, %c0_i32_0 : i32, i32, i32
  }
  func.func @transform_9(%arg0: i32, %arg1: i32) -> (i32, i32, i32) {
    %c0_i32 = arith.constant 0 : i32
    %c0_i32_0 = arith.constant 0 : i32
    %c0_i32_1 = arith.constant 0 : i32
    return %arg1, %c0_i32, %c0_i32_0 : i32, i32, i32
  }
  func.func @transform_10(%arg0: i32, %arg1: i32) -> (i32, i32, i32) {
    %c0_i32 = arith.constant 0 : i32
    %c0_i32_0 = arith.constant 0 : i32
    %c0_i32_1 = arith.constant 0 : i32
    return %arg1, %c0_i32, %c0_i32_0 : i32, i32, i32
  }
  func.func @transform_11(%arg0: i32, %arg1: i32) -> (i32, i32, i32) {
    %c0_i32 = arith.constant 0 : i32
    %c0_i32_0 = arith.constant 0 : i32
    %c0_i32_1 = arith.constant 0 : i32
    return %arg1, %c0_i32, %c0_i32_0 : i32, i32, i32
  }
  func.func @transform_12(%arg0: i32, %arg1: i32) -> (i32, i32, i32, i32) {
    %c0_i32 = arith.constant 0 : i32
    %c0_i32_0 = arith.constant 0 : i32
    %c0_i32_1 = arith.constant 0 : i32
    return %arg1, %arg0, %c0_i32, %c0_i32_0 : i32, i32, i32, i32
  }
}

</mosaic_0001>

<llo_original>
// kernel: prompt_model_forward.1
$region0: #{prompt_model_forward.1}
  #allocation0 [shape = 'u32[]', space=smem, size = 0x4, offset = 0x4, fixed_abs, tag = 'smem constant byte address 0x4 - core index']
  #allocation1 [shape = 'u32[72,128]{1,0:T(1,128)}', space=vmem, size = 0x9000, scoped, tag = 'internal scratch']
  #allocation2 [shape = 'f32[1,16,32]{2,1,0:T(8,128)}', space=vmem, size = 0x2000, scoped, tag = 'scratch operand']
  %s0 = inlined_call_operand.vmem [shape: f32[2,16,32], index: 0, kind: input, shape index: {}]
  %s1 = inlined_call_operand.vmem [shape: f32[2,1,16], index: 1, kind: input, shape index: {}]
  %s2 = inlined_call_operand.vmem [shape: f32[2,1,32], index: 2, kind: input, shape index: {}]
  %s3 = inlined_call_operand.vmem [shape: f32[2,1,32], index: 3, kind: input, shape index: {}]
  %s4 = inlined_call_operand.vmem [shape: bf16[2,32,96], index: 4, kind: input, shape index: {}]
  %s5 = inlined_call_operand.vmem [shape: bf16[2,32,32], index: 5, kind: input, shape index: {}]
  %s6 = inlined_call_operand.vmem [shape: f32[2,1,32], index: 6, kind: input, shape index: {}]
  %s7 = inlined_call_operand.vmem [shape: f32[2,1,32], index: 7, kind: input, shape index: {}]
  %s8 = inlined_call_operand.vmem [shape: bf16[2,32,64], index: 8, kind: input, shape index: {}]
  %s9 = inlined_call_operand.vmem [shape: f32[2,1,64], index: 9, kind: input, shape index: {}]
  %s10 = inlined_call_operand.vmem [shape: bf16[2,64,32], index: 10, kind: input, shape index: {}]
  %s11 = inlined_call_operand.vmem [shape: f32[2,1,32], index: 11, kind: input, shape index: {}]
  %s12 = inlined_call_operand.vmem [shape: f32[2,2,16,32], index: 12, kind: output, shape index: {}]
  %s13 = sld [smem:[#allocation0]]
  $region85: #{prompt_model_forward.1} parent=0
    _
  %s15 = ssub.s32 1, %s13
  %s16 = scalar_select 0, %s15, %s13
  loop: start=0, step=1, limit=6
  $region2: #{prompt_model_forward.1} parent=0 // loop_pre_header
    _
  $region3: #{prompt_model_forward.1} parent=0 // loop_header
    %s18 = sphi 0, %s22
    %p19 = scmp.ge.s32.totalorder %s18, 6
    %s25 = sphi 0, %s37
    %s26 = sphi 0, %s33
    %s27 = sphi 0, %s25
    %s28 = sphi 0, %s26
    %s29 = sphi 0, %s27
    %s30 = sphi 0, %s28
    %s40 = sphi 0, %s42
    %s43 = sphi 0, %s40
    %s44 = sphi 0, %s43
    %s60 = sphi 0, %s44
    %s66 = sphi 0, %s68
    %s69 = sphi 0, %s66
    %s70 = sphi 0, %s69
    %s86 = sphi 0, %s70
    %s92 = sphi 0, %s94
    %s95 = sphi 0, %s92
    %s96 = sphi 0, %s95
    %s112 = sphi 0, %s96
    %s118 = sphi 0, %s120
    %s121 = sphi 0, %s118
    %s122 = sphi 0, %s121
    %s138 = sphi 0, %s122
    %s144 = sphi 0, %s146
    %s147 = sphi 0, %s144
    %s148 = sphi 0, %s147
    %s164 = sphi 0, %s148
    %s170 = sphi 0, %s172
    %s173 = sphi 0, %s170
    %s174 = sphi 0, %s173
    %s190 = sphi 0, %s174
    %s196 = sphi 0, %s198
    %s199 = sphi 0, %s196
    %s200 = sphi 0, %s199
    %s216 = sphi 0, %s200
    %s222 = sphi 0, %s224
    %s225 = sphi 0, %s222
    %s226 = sphi 0, %s225
    %s242 = sphi 0, %s226
    %s248 = sphi 0, %s250
    %s251 = sphi 0, %s248
    %s252 = sphi 0, %s251
    %s268 = sphi 0, %s252
    %s274 = sphi 0, %s276
    %s277 = sphi 0, %s274
    %s278 = sphi 0, %s277
    %s294 = sphi 0, %s278
    %s300 = sphi 0, %s302
    %s303 = sphi 0, %s300
    %s304 = sphi 0, %s303
    %s320 = sphi 0, %s304
    %s326 = sphi 0, %s328
    %s329 = sphi 0, %s326
    %s330 = sphi 0, %s329
    %s346 = sphi 0, %s330
    %s354 = sphi 0, %s356
    %s357 = sphi 0, %s354
    %s358 = sphi 0, %s357
    %s374 = sphi 0, %s358
  $region4: #{prompt_model_forward.1} parent=0 // loop_header_branch
    %21 = sbr.rel (%p19) target = $region8
  $region5: #{prompt_model_forward.1} parent=0 // loop_body
    %s23 = ssub.s32 %s18, 1
    %s24 = ssub.s32 %s18, 2
    %s31 = sadd.s32 1, %s26
    %p32 = scmp.ge.s32.totalorder %s31, 2
    %s33 = scalar_select %p32, 0, %s31
    %s34 = sadd.s32 1, %s25
    %s35 = scalar_select %p32, %s34, %s25
    %p36 = scmp.ge.s32.totalorder %s35, 2
    %s37 = scalar_select %p36, 0, %s35
    %s38 = ssub.s32 %s25, %s37
    %p39 = scmp.eq.s32.totalorder %s38, 0
    %s41 = sadd.s32 %s40, 1
    %s42 = scalar_select %p39, %s40, %s41
    %p45 = pneg %p39
    %p46 = scmp.eq.s32.totalorder %s18, 3
    %p47 = por %p45, %p46
    %p48 = scmp.ne.s32.totalorder %s40, %s43
    %p49 = scmp.eq.s32.totalorder %s18, 0
    %p50 = por %p48, %p49
    %p51 = scmp.ne.s32.totalorder %s40, %s43
    %p52 = scmp.eq.s32.totalorder %s23, 3
    %p53 = por %p51, %p52
    %p54 = scmp.ne.s32.totalorder %s43, %s44
    %p55 = scmp.eq.s32.totalorder %s23, 0
    %p56 = por %p54, %p55
    %p57 = scmp.ne.s32.totalorder %s43, %s44
    %p58 = scmp.eq.s32.totalorder %s24, 3
    %p59 = por %p57, %p58
    %p61 = scmp.ne.s32.totalorder %s44, %s60
    %p62 = scmp.eq.s32.totalorder %s24, 0
    %p63 = por %p61, %p62
    %s64 = ssub.s32 %s25, %s37
    %p65 = scmp.eq.s32.totalorder %s64, 0
    %s67 = sadd.s32 %s66, 1
    %s68 = scalar_select %p65, %s66, %s67
    %p71 = pneg %p65
    %p72 = scmp.eq.s32.totalorder %s18, 3
    %p73 = por %p71, %p72
    %p74 = scmp.ne.s32.totalorder %s66, %s69
    %p75 = scmp.eq.s32.totalorder %s18, 0
    %p76 = por %p74, %p75
    %p77 = scmp.ne.s32.totalorder %s66, %s69
    %p78 = scmp.eq.s32.totalorder %s23, 3
    %p79 = por %p77, %p78
    %p80 = scmp.ne.s32.totalorder %s69, %s70
    %p81 = scmp.eq.s32.totalorder %s23, 0
    %p82 = por %p80, %p81
    %p83 = scmp.ne.s32.totalorder %s69, %s70
    %p84 = scmp.eq.s32.totalorder %s24, 3
    %p85 = por %p83, %p84
    %p87 = scmp.ne.s32.totalorder %s70, %s86
    %p88 = scmp.eq.s32.totalorder %s24, 0
    %p89 = por %p87, %p88
    %s90 = ssub.s32 %s26, %s33
    %p91 = scmp.eq.s32.totalorder %s90, 0
    %s93 = sadd.s32 %s92, 1
    %s94 = scalar_select %p91, %s92, %s93
    %p97 = pneg %p91
    %p98 = scmp.eq.s32.totalorder %s18, 3
    %p99 = por %p97, %p98
    %p100 = scmp.ne.s32.totalorder %s92, %s95
    %p101 = scmp.eq.s32.totalorder %s18, 0
    %p102 = por %p100, %p101
    %p103 = scmp.ne.s32.totalorder %s92, %s95
    %p104 = scmp.eq.s32.totalorder %s23, 3
    %p105 = por %p103, %p104
    %p106 = scmp.ne.s32.totalorder %s95, %s96
    %p107 = scmp.eq.s32.totalorder %s23, 0
    %p108 = por %p106, %p107
    %p109 = scmp.ne.s32.totalorder %s95, %s96
    %p110 = scmp.eq.s32.totalorder %s24, 3
    %p111 = por %p109, %p110
    %p113 = scmp.ne.s32.totalorder %s96, %s112
    %p114 = scmp.eq.s32.totalorder %s24, 0
    %p115 = por %p113, %p114
    %s116 = ssub.s32 %s26, %s33
    %p117 = scmp.eq.s32.totalorder %s116, 0
    %s119 = sadd.s32 %s118, 1
    %s120 = scalar_select %p117, %s118, %s119
    %p123 = pneg %p117
    %p124 = scmp.eq.s32.totalorder %s18, 3
    %p125 = por %p123, %p124
    %p126 = scmp.ne.s32.totalorder %s118, %s121
    %p127 = scmp.eq.s32.totalorder %s18, 0
    %p128 = por %p126, %p127
    %p129 = scmp.ne.s32.totalorder %s118, %s121
    %p130 = scmp.eq.s32.totalorder %s23, 3
    %p131 = por %p129, %p130
    %p132 = scmp.ne.s32.totalorder %s121, %s122
    %p133 = scmp.eq.s32.totalorder %s23, 0
    %p134 = por %p132, %p133
    %p135 = scmp.ne.s32.totalorder %s121, %s122
    %p136 = scmp.eq.s32.totalorder %s24, 3
    %p137 = por %p135, %p136
    %p139 = scmp.ne.s32.totalorder %s122, %s138
    %p140 = scmp.eq.s32.totalorder %s24, 0
    %p141 = por %p139, %p140
    %s142 = ssub.s32 %s26, %s33
    %p143 = scmp.eq.s32.totalorder %s142, 0
    %s145 = sadd.s32 %s144, 1
    %s146 = scalar_select %p143, %s144, %s145
    %p149 = pneg %p143
    %p150 = scmp.eq.s32.totalorder %s18, 3
    %p151 = por %p149, %p150
    %p152 = scmp.ne.s32.totalorder %s144, %s147
    %p153 = scmp.eq.s32.totalorder %s18, 0
    %p154 = por %p152, %p153
    %p155 = scmp.ne.s32.totalorder %s144, %s147
    %p156 = scmp.eq.s32.totalorder %s23, 3
    %p157 = por %p155, %p156
    %p158 = scmp.ne.s32.totalorder %s147, %s148
    %p159 = scmp.eq.s32.totalorder %s23, 0
    %p160 = por %p158, %p159
    %p161 = scmp.ne.s32.totalorder %s147, %s148
    %p162 = scmp.eq.s32.totalorder %s24, 3
    %p163 = por %p161, %p162
    %p165 = scmp.ne.s32.totalorder %s148, %s164
    %p166 = scmp.eq.s32.totalorder %s24, 0
    %p167 = por %p165, %p166
    %s168 = ssub.s32 %s26, %s33
    %p169 = scmp.eq.s32.totalorder %s168, 0
    %s171 = sadd.s32 %s170, 1
    %s172 = scalar_select %p169, %s170, %s171
    %p175 = pneg %p169
    %p176 = scmp.eq.s32.totalorder %s18, 3
    %p177 = por %p175, %p176
    %p178 = scmp.ne.s32.totalorder %s170, %s173
    %p179 = scmp.eq.s32.totalorder %s18, 0
    %p180 = por %p178, %p179
    %p181 = scmp.ne.s32.totalorder %s170, %s173
    %p182 = scmp.eq.s32.totalorder %s23, 3
    %p183 = por %p181, %p182
    %p184 = scmp.ne.s32.totalorder %s173, %s174
    %p185 = scmp.eq.s32.totalorder %s23, 0
    %p186 = por %p184, %p185
    %p187 = scmp.ne.s32.totalorder %s173, %s174
    %p188 = scmp.eq.s32.totalorder %s24, 3
    %p189 = por %p187, %p188
    %p191 = scmp.ne.s32.totalorder %s174, %s190
    %p192 = scmp.eq.s32.totalorder %s24, 0
    %p193 = por %p191, %p192
    %s194 = ssub.s32 %s26, %s33
    %p195 = scmp.eq.s32.totalorder %s194, 0
    %s197 = sadd.s32 %s196, 1
    %s198 = scalar_select %p195, %s196, %s197
    %p201 = pneg %p195
    %p202 = scmp.eq.s32.totalorder %s18, 3
    %p203 = por %p201, %p202
    %p204 = scmp.ne.s32.totalorder %s196, %s199
    %p205 = scmp.eq.s32.totalorder %s18, 0
    %p206 = por %p204, %p205
    %p207 = scmp.ne.s32.totalorder %s196, %s199
    %p208 = scmp.eq.s32.totalorder %s23, 3
    %p209 = por %p207, %p208
    %p210 = scmp.ne.s32.totalorder %s199, %s200
    %p211 = scmp.eq.s32.totalorder %s23, 0
    %p212 = por %p210, %p211
    %p213 = scmp.ne.s32.totalorder %s199, %s200
    %p214 = scmp.eq.s32.totalorder %s24, 3
    %p215 = por %p213, %p214
    %p217 = scmp.ne.s32.totalorder %s200, %s216
    %p218 = scmp.eq.s32.totalorder %s24, 0
    %p219 = por %p217, %p218
    %s220 = ssub.s32 %s26, %s33
    %p221 = scmp.eq.s32.totalorder %s220, 0
    %s223 = sadd.s32 %s222, 1
    %s224 = scalar_select %p221, %s222, %s223
    %p227 = pneg %p221
    %p228 = scmp.eq.s32.totalorder %s18, 3
    %p229 = por %p227, %p228
    %p230 = scmp.ne.s32.totalorder %s222, %s225
    %p231 = scmp.eq.s32.totalorder %s18, 0
    %p232 = por %p230, %p231
    %p233 = scmp.ne.s32.totalorder %s222, %s225
    %p234 = scmp.eq.s32.totalorder %s23, 3
    %p235 = por %p233, %p234
    %p236 = scmp.ne.s32.totalorder %s225, %s226
    %p237 = scmp.eq.s32.totalorder %s23, 0
    %p238 = por %p236, %p237
    %p239 = scmp.ne.s32.totalorder %s225, %s226
    %p240 = scmp.eq.s32.totalorder %s24, 3
    %p241 = por %p239, %p240
    %p243 = scmp.ne.s32.totalorder %s226, %s242
    %p244 = scmp.eq.s32.totalorder %s24, 0
    %p245 = por %p243, %p244
    %s246 = ssub.s32 %s26, %s33
    %p247 = scmp.eq.s32.totalorder %s246, 0
    %s249 = sadd.s32 %s248, 1
    %s250 = scalar_select %p247, %s248, %s249
    %p253 = pneg %p247
    %p254 = scmp.eq.s32.totalorder %s18, 3
    %p255 = por %p253, %p254
    %p256 = scmp.ne.s32.totalorder %s248, %s251
    %p257 = scmp.eq.s32.totalorder %s18, 0
    %p258 = por %p256, %p257
    %p259 = scmp.ne.s32.totalorder %s248, %s251
    %p260 = scmp.eq.s32.totalorder %s23, 3
    %p261 = por %p259, %p260
    %p262 = scmp.ne.s32.totalorder %s251, %s252
    %p263 = scmp.eq.s32.totalorder %s23, 0
    %p264 = por %p262, %p263
    %p265 = scmp.ne.s32.totalorder %s251, %s252
    %p266 = scmp.eq.s32.totalorder %s24, 3
    %p267 = por %p265, %p266
    %p269 = scmp.ne.s32.totalorder %s252, %s268
    %p270 = scmp.eq.s32.totalorder %s24, 0
    %p271 = por %p269, %p270
    %s272 = ssub.s32 %s26, %s33
    %p273 = scmp.eq.s32.totalorder %s272, 0
    %s275 = sadd.s32 %s274, 1
    %s276 = scalar_select %p273, %s274, %s275
    %p279 = pneg %p273
    %p280 = scmp.eq.s32.totalorder %s18, 3
    %p281 = por %p279, %p280
    %p282 = scmp.ne.s32.totalorder %s274, %s277
    %p283 = scmp.eq.s32.totalorder %s18, 0
    %p284 = por %p282, %p283
    %p285 = scmp.ne.s32.totalorder %s274, %s277
    %p286 = scmp.eq.s32.totalorder %s23, 3
    %p287 = por %p285, %p286
    %p288 = scmp.ne.s32.totalorder %s277, %s278
    %p289 = scmp.eq.s32.totalorder %s23, 0
    %p290 = por %p288, %p289
    %p291 = scmp.ne.s32.totalorder %s277, %s278
    %p292 = scmp.eq.s32.totalorder %s24, 3
    %p293 = por %p291, %p292
    %p295 = scmp.ne.s32.totalorder %s278, %s294
    %p296 = scmp.eq.s32.totalorder %s24, 0
    %p297 = por %p295, %p296
    %s298 = ssub.s32 %s26, %s33
    %p299 = scmp.eq.s32.totalorder %s298, 0
    %s301 = sadd.s32 %s300, 1
    %s302 = scalar_select %p299, %s300, %s301
    %p305 = pneg %p299
    %p306 = scmp.eq.s32.totalorder %s18, 3
    %p307 = por %p305, %p306
    %p308 = scmp.ne.s32.totalorder %s300, %s303
    %p309 = scmp.eq.s32.totalorder %s18, 0
    %p310 = por %p308, %p309
    %p311 = scmp.ne.s32.totalorder %s300, %s303
    %p312 = scmp.eq.s32.totalorder %s23, 3
    %p313 = por %p311, %p312
    %p314 = scmp.ne.s32.totalorder %s303, %s304
    %p315 = scmp.eq.s32.totalorder %s23, 0
    %p316 = por %p314, %p315
    %p317 = scmp.ne.s32.totalorder %s303, %s304
    %p318 = scmp.eq.s32.totalorder %s24, 3
    %p319 = por %p317, %p318
    %p321 = scmp.ne.s32.totalorder %s304, %s320
    %p322 = scmp.eq.s32.totalorder %s24, 0
    %p323 = por %p321, %p322
    %s324 = ssub.s32 %s26, %s33
    %p325 = scmp.eq.s32.totalorder %s324, 0
    %s327 = sadd.s32 %s326, 1
    %s328 = scalar_select %p325, %s326, %s327
    %p331 = pneg %p325
    %p332 = scmp.eq.s32.totalorder %s18, 3
    %p333 = por %p331, %p332
    %p334 = scmp.ne.s32.totalorder %s326, %s329
    %p335 = scmp.eq.s32.totalorder %s18, 0
    %p336 = por %p334, %p335
    %p337 = scmp.ne.s32.totalorder %s326, %s329
    %p338 = scmp.eq.s32.totalorder %s23, 3
    %p339 = por %p337, %p338
    %p340 = scmp.ne.s32.totalorder %s329, %s330
    %p341 = scmp.eq.s32.totalorder %s23, 0
    %p342 = por %p340, %p341
    %p343 = scmp.ne.s32.totalorder %s329, %s330
    %p344 = scmp.eq.s32.totalorder %s24, 3
    %p345 = por %p343, %p344
    %p347 = scmp.ne.s32.totalorder %s330, %s346
    %p348 = scmp.eq.s32.totalorder %s24, 0
    %p349 = por %p347, %p348
    %s350 = ssub.s32 %s26, %s33
    %s351 = ssub.s32 %s25, %s37
    %s352 = sor.u32 %s350, %s351
    %p353 = scmp.eq.s32.totalorder %s352, 0
    %s355 = sadd.s32 %s354, 1
    %s356 = scalar_select %p353, %s354, %s355
    %p359 = pneg %p353
    %p360 = scmp.eq.s32.totalorder %s18, 3
    %p361 = por %p359, %p360
    %p362 = scmp.ne.s32.totalorder %s354, %s357
    %p363 = scmp.eq.s32.totalorder %s18, 0
    %p364 = por %p362, %p363
    %p365 = scmp.ne.s32.totalorder %s354, %s357
    %p366 = scmp.eq.s32.totalorder %s23, 3
    %p367 = por %p365, %p366
    %p368 = scmp.ne.s32.totalorder %s357, %s358
    %p369 = scmp.eq.s32.totalorder %s23, 0
    %p370 = por %p368, %p369
    %p371 = scmp.ne.s32.totalorder %s357, %s358
    %p372 = scmp.eq.s32.totalorder %s24, 3
    %p373 = por %p371, %p372
    %p375 = scmp.ne.s32.totalorder %s358, %s374
    %p376 = scmp.eq.s32.totalorder %s24, 0
    %p377 = por %p375, %p376
    %p378 = scmp.le.s32.totalorder 1, %s18
    %p379 = scmp.lt.s32.totalorder %s18, 5
    %p380 = pnand %p378, %p379
    %p381 = pneg %p380
    // Predicated region
    $region9: #{prompt_model_forward.1} parent=5 // pred_check
      _
    $region10: #{prompt_model_forward.1} parent=5 // pred_check_branch
      %383 = sbr.rel (%p380) target = $region12
    $region11: #{prompt_model_forward.1} parent=5 // pred_region
      %s384 = ssub.s32 %s18, 1
    $region12: #{prompt_model_forward.1} parent=5 // pred_fallthru
      _
    %p385 = scmp.lt.s32.totalorder %s18, 4
    // Predicated region
    $region13: #{prompt_model_forward.1} parent=5 // pred_check
      %p386 = pneg %p385
    $region14: #{prompt_model_forward.1} parent=5 // pred_check_branch
      %388 = sbr.rel (%p386) target = $region16
    $region15: #{prompt_model_forward.1} parent=5 // pred_region
      // Predicated region
      $region17: #{prompt_model_forward.1} parent=15 // pred_check
        %p389 = pneg %p50
      $region18: #{prompt_model_forward.1} parent=15 // pred_check_branch
        %391 = sbr.rel (%p389) target = $region20
      $region19: #{prompt_model_forward.1} parent=15 // pred_region
        %p392 = scmp.lt.s32.totalorder %s25, 1
        %s393 = scalar_select %p392, %s25, 1
        %s394 = smul.addr %s393, 2
        %s395 = smul.addr %s394, 8
        %s396 = scalar_lea.vmem %s0, %s395
      $region20: #{prompt_model_forward.1} parent=15 // pred_fallthru
        _
      // Predicated region
      $region21: #{prompt_model_forward.1} parent=15 // pred_check
        %p397 = pneg %p76
      $region22: #{prompt_model_forward.1} parent=15 // pred_check_branch
        %399 = sbr.rel (%p397) target = $region24
      $region23: #{prompt_model_forward.1} parent=15 // pred_region
        %p400 = scmp.lt.s32.totalorder %s25, 1
        %s401 = scalar_select %p400, %s25, 1
        %s402 = scalar_lea.vmem %s1, %s401
      $region24: #{prompt_model_forward.1} parent=15 // pred_fallthru
        _
      // Predicated region
      $region25: #{prompt_model_forward.1} parent=15 // pred_check
        %p403 = pneg %p102
      $region26: #{prompt_model_forward.1} parent=15 // pred_check_branch
        %405 = sbr.rel (%p403) target = $region28
      $region27: #{prompt_model_forward.1} parent=15 // pred_region
        %p406 = scmp.lt.s32.totalorder %s26, 1
        %s407 = scalar_select %p406, %s26, 1
        %s408 = scalar_lea.vmem %s2, %s407
      $region28: #{prompt_model_forward.1} parent=15 // pred_fallthru
        _
      // Predicated region
      $region29: #{prompt_model_forward.1} parent=15 // pred_check
        %p409 = pneg %p128
      $region30: #{prompt_model_forward.1} parent=15 // pred_check_branch
        %411 = sbr.rel (%p409) target = $region32
      $region31: #{prompt_model_forward.1} parent=15 // pred_region
        %p412 = scmp.lt.s32.totalorder %s26, 1
        %s413 = scalar_select %p412, %s26, 1
        %s414 = scalar_lea.vmem %s3, %s413
      $region32: #{prompt_model_forward.1} parent=15 // pred_fallthru
        _
      // Predicated region
      $region33: #{prompt_model_forward.1} parent=15 // pred_check
        %p415 = pneg %p154
      $region34: #{prompt_model_forward.1} parent=15 // pred_check_branch
        %417 = sbr.rel (%p415) target = $region36
      $region35: #{prompt_model_forward.1} parent=15 // pred_region
        %p418 = scmp.lt.s32.totalorder %s26, 1
        %s419 = scalar_select %p418, %s26, 1
        %s420 = smul.addr %s419, 4
        %s421 = smul.addr %s420, 4
        %s422 = scalar_lea.vmem %s4, %s421
      $region36: #{prompt_model_forward.1} parent=15 // pred_fallthru
        _
      // Predicated region
      $region37: #{prompt_model_forward.1} parent=15 // pred_check
        %p423 = pneg %p180
      $region38: #{prompt_model_forward.1} parent=15 // pred_check_branch
        %425 = sbr.rel (%p423) target = $region40
      $region39: #{prompt_model_forward.1} parent=15 // pred_region
        %p426 = scmp.lt.s32.totalorder %s26, 1
        %s427 = scalar_select %p426, %s26, 1
        %s428 = smul.addr %s427, 4
        %s429 = smul.addr %s428, 4
        %s430 = scalar_lea.vmem %s5, %s429
      $region40: #{prompt_model_forward.1} parent=15 // pred_fallthru
        _
      // Predicated region
      $region41: #{prompt_model_forward.1} parent=15 // pred_check
        %p431 = pneg %p206
      $region42: #{prompt_model_forward.1} parent=15 // pred_check_branch
        %433 = sbr.rel (%p431) target = $region44
      $region43: #{prompt_model_forward.1} parent=15 // pred_region
        %p434 = scmp.lt.s32.totalorder %s26, 1
        %s435 = scalar_select %p434, %s26, 1
        %s436 = scalar_lea.vmem %s6, %s435
      $region44: #{prompt_model_forward.1} parent=15 // pred_fallthru
        _
      // Predicated region
      $region45: #{prompt_model_forward.1} parent=15 // pred_check
        %p437 = pneg %p232
      $region46: #{prompt_model_forward.1} parent=15 // pred_check_branch
        %439 = sbr.rel (%p437) target = $region48
      $region47: #{prompt_model_forward.1} parent=15 // pred_region
        %p440 = scmp.lt.s32.totalorder %s26, 1
        %s441 = scalar_select %p440, %s26, 1
        %s442 = scalar_lea.vmem %s7, %s441
      $region48: #{prompt_model_forward.1} parent=15 // pred_fallthru
        _
      // Predicated region
      $region49: #{prompt_model_forward.1} parent=15 // pred_check
        %p443 = pneg %p258
      $region50: #{prompt_model_forward.1} parent=15 // pred_check_branch
        %445 = sbr.rel (%p443) target = $region52
      $region51: #{prompt_model_forward.1} parent=15 // pred_region
        %p446 = scmp.lt.s32.totalorder %s26, 1
        %s447 = scalar_select %p446, %s26, 1
        %s448 = smul.addr %s447, 4
        %s449 = smul.addr %s448, 4
        %s450 = scalar_lea.vmem %s8, %s449
      $region52: #{prompt_model_forward.1} parent=15 // pred_fallthru
        _
      // Predicated region
      $region53: #{prompt_model_forward.1} parent=15 // pred_check
        %p451 = pneg %p284
      $region54: #{prompt_model_forward.1} parent=15 // pred_check_branch
        %453 = sbr.rel (%p451) target = $region56
      $region55: #{prompt_model_forward.1} parent=15 // pred_region
        %p454 = scmp.lt.s32.totalorder %s26, 1
        %s455 = scalar_select %p454, %s26, 1
        %s456 = scalar_lea.vmem %s9, %s455
      $region56: #{prompt_model_forward.1} parent=15 // pred_fallthru
        _
      // Predicated region
      $region57: #{prompt_model_forward.1} parent=15 // pred_check
        %p457 = pneg %p310
      $region58: #{prompt_model_forward.1} parent=15 // pred_check_branch
        %459 = sbr.rel (%p457) target = $region60
      $region59: #{prompt_model_forward.1} parent=15 // pred_region
        %p460 = scmp.lt.s32.totalorder %s26, 1
        %s461 = scalar_select %p460, %s26, 1
        %s462 = smul.addr %s461, 8
        %s463 = smul.addr %s462, 4
        %s464 = scalar_lea.vmem %s10, %s463
      $region60: #{prompt_model_forward.1} parent=15 // pred_fallthru
        _
      // Predicated region
      $region61: #{prompt_model_forward.1} parent=15 // pred_check
        %p465 = pneg %p336
      $region62: #{prompt_model_forward.1} parent=15 // pred_check_branch
        %467 = sbr.rel (%p465) target = $region64
      $region63: #{prompt_model_forward.1} parent=15 // pred_region
        %p468 = scmp.lt.s32.totalorder %s26, 1
        %s469 = scalar_select %p468, %s26, 1
        %s470 = scalar_lea.vmem %s11, %s469
      $region64: #{prompt_model_forward.1} parent=15 // pred_fallthru
        _
    $region16: #{prompt_model_forward.1} parent=5 // pred_fallthru
      _
    %p471 = scmp.le.s32.totalorder 1, %s18
    %p472 = scmp.lt.s32.totalorder %s18, 5
    %p473 = pnand %p471, %p472
    %p474 = pneg %p473
    // Predicated region
    $region65: #{prompt_model_forward.1} parent=5 // pred_check
      _
    $region66: #{prompt_model_forward.1} parent=5 // pred_check_branch
      %476 = sbr.rel (%p473) target = $region68
    $region67: #{prompt_model_forward.1} parent=5 // pred_region
      %s477 = ssub.s32 %s18, 1
      %p478 = scmp.lt.s32.totalorder %s27, 1
      %s479 = scalar_select %p478, %s27, 1
      %s480 = smul.addr %s479, 2
      %s481 = smul.addr %s480, 8
      %s482 = scalar_lea.vmem %s0, %s481
      %p483 = pneg %p56
      %p484 = pneg %p53
      %p485 = scmp.lt.s32.totalorder %s27, 1
      %s486 = scalar_select %p485, %s27, 1
      %s487 = scalar_lea.vmem %s1, %s486
      %p488 = pneg %p82
      %p489 = pneg %p79
      %p490 = scmp.lt.s32.totalorder %s28, 1
      %s491 = scalar_select %p490, %s28, 1
      %s492 = scalar_lea.vmem %s2, %s491
      %p493 = pneg %p108
      %p494 = pneg %p105
      %p495 = scmp.lt.s32.totalorder %s28, 1
      %s496 = scalar_select %p495, %s28, 1
      %s497 = scalar_lea.vmem %s3, %s496
      %p498 = pneg %p134
      %p499 = pneg %p131
      %p500 = scmp.lt.s32.totalorder %s28, 1
      %s501 = scalar_select %p500, %s28, 1
      %s502 = smul.addr %s501, 4
      %s503 = smul.addr %s502, 4
      %s504 = scalar_lea.vmem %s4, %s503
      %p505 = pneg %p160
      %p506 = pneg %p157
      %p507 = scmp.lt.s32.totalorder %s28, 1
      %s508 = scalar_select %p507, %s28, 1
      %s509 = smul.addr %s508, 4
      %s510 = smul.addr %s509, 4
      %s511 = scalar_lea.vmem %s5, %s510
      %p512 = pneg %p186
      %p513 = pneg %p183
      %p514 = scmp.lt.s32.totalorder %s28, 1
      %s515 = scalar_select %p514, %s28, 1
      %s516 = scalar_lea.vmem %s6, %s515
      %p517 = pneg %p212
      %p518 = pneg %p209
      %p519 = scmp.lt.s32.totalorder %s28, 1
      %s520 = scalar_select %p519, %s28, 1
      %s521 = scalar_lea.vmem %s7, %s520
      %p522 = pneg %p238
      %p523 = pneg %p235
      %p524 = scmp.lt.s32.totalorder %s28, 1
      %s525 = scalar_select %p524, %s28, 1
      %s526 = smul.addr %s525, 4
      %s527 = smul.addr %s526, 4
      %s528 = scalar_lea.vmem %s8, %s527
      %p529 = pneg %p264
      %p530 = pneg %p261
      %p531 = scmp.lt.s32.totalorder %s28, 1
      %s532 = scalar_select %p531, %s28, 1
      %s533 = scalar_lea.vmem %s9, %s532
      %p534 = pneg %p290
      %p535 = pneg %p287
      %p536 = scmp.lt.s32.totalorder %s28, 1
      %s537 = scalar_select %p536, %s28, 1
      %s538 = smul.addr %s537, 8
      %s539 = smul.addr %s538, 4
      %s540 = scalar_lea.vmem %s10, %s539
      %p541 = pneg %p316
      %p542 = pneg %p313
      %p543 = scmp.lt.s32.totalorder %s28, 1
      %s544 = scalar_select %p543, %s28, 1
      %s545 = scalar_lea.vmem %s11, %s544
      %p546 = pneg %p342
      %p547 = pneg %p339
      %p548 = pneg %p370
      %p549 = pneg %p367
      %p550 = scmp.lt.s32.totalorder %s28, 1
      %s551 = scalar_select %p550, %s28, 1
      %p552 = scmp.lt.s32.totalorder %s27, 1
      %s553 = scalar_select %p552, %s27, 1
      %s554 = smul.addr %s553, 2
      %s555 = smul.addr %s551, 4
      %s556 = sadd.s32 %s554, %s555
      %s557 = smul.addr %s556, 8
      %s558 = scalar_lea.vmem %s12, %s557
      %p559 = scmp.lt.s32.totalorder %s27, 1
      %s560 = scalar_select %p559, %s27, 1
      %s561 = smul.addr %s560, 2
      %s562 = smul.addr %s561, 8
      %s563 = scalar_lea.vmem %s0, %s562
      %p564 = scmp.lt.s32.totalorder %s27, 1
      %s565 = scalar_select %p564, %s27, 1
      %s566 = scalar_lea.vmem %s1, %s565
      %p567 = scmp.lt.s32.totalorder %s28, 1
      %s568 = scalar_select %p567, %s28, 1
      %s569 = scalar_lea.vmem %s2, %s568
      %p570 = scmp.lt.s32.totalorder %s28, 1
      %s571 = scalar_select %p570, %s28, 1
      %s572 = scalar_lea.vmem %s3, %s571
      %p573 = scmp.lt.s32.totalorder %s28, 1
      %s574 = scalar_select %p573, %s28, 1
      %s575 = smul.addr %s574, 4
      %s576 = smul.addr %s575, 4
      %s577 = scalar_lea.vmem %s4, %s576
      %p578 = scmp.lt.s32.totalorder %s28, 1
      %s579 = scalar_select %p578, %s28, 1
      %s580 = smul.addr %s579, 4
      %s581 = smul.addr %s580, 4
      %s582 = scalar_lea.vmem %s5, %s581
      %p583 = scmp.lt.s32.totalorder %s28, 1
      %s584 = scalar_select %p583, %s28, 1
      %s585 = scalar_lea.vmem %s6, %s584
      %p586 = scmp.lt.s32.totalorder %s28, 1
      %s587 = scalar_select %p586, %s28, 1
      %s588 = scalar_lea.vmem %s7, %s587
      %p589 = scmp.lt.s32.totalorder %s28, 1
      %s590 = scalar_select %p589, %s28, 1
      %s591 = smul.addr %s590, 4
      %s592 = smul.addr %s591, 4
      %s593 = scalar_lea.vmem %s8, %s592
      %p594 = scmp.lt.s32.totalorder %s28, 1
      %s595 = scalar_select %p594, %s28, 1
      %s596 = scalar_lea.vmem %s9, %s595
      %p597 = scmp.lt.s32.totalorder %s28, 1
      %s598 = scalar_select %p597, %s28, 1
      %s599 = smul.addr %s598, 8
      %s600 = smul.addr %s599, 4
      %s601 = scalar_lea.vmem %s10, %s600
      %p602 = scmp.lt.s32.totalorder %s28, 1
      %s603 = scalar_select %p602, %s28, 1
      %s604 = scalar_lea.vmem %s11, %s603
      %p605 = scmp.lt.s32.totalorder %s28, 1
      %s606 = scalar_select %p605, %s28, 1
      %p607 = scmp.lt.s32.totalorder %s27, 1
      %s608 = scalar_select %p607, %s27, 1
      %s609 = smul.addr %s608, 2
      %s610 = smul.addr %s606, 4
      %s611 = sadd.s32 %s609, %s610
      %s612 = smul.addr %s611, 8
      %s613 = scalar_lea.vmem %s12, %s612
      %p615 = scmp.eq.s32.totalorder %s28, 0
      // Predicated region
      $region69: #{prompt_model_forward.1} parent=67 // pred_check
        %p616 = pneg %p615
      $region70: #{prompt_model_forward.1} parent=67 // pred_check_branch
        %618 = sbr.rel (%p616) target = $region72
      $region71: #{prompt_model_forward.1} parent=67 // pred_region
        %v619 = vld [vmem:[%s563] sm:$0xff]
        %v620 = vld [vmem:[%s563 + $0x8] sm:$0xff]
        %vm621 = vcmask 261120
        %622 = vst.msk [vmem:[#allocation2] sm:$0xff] %vm621, %v619
        %623 = vst.msk [vmem:[#allocation2 + $0x8] sm:$0xff] %vm621, %v620
      $region72: #{prompt_model_forward.1} parent=67 // pred_fallthru
        _
      %v624 = vld [vmem:[#allocation2] sm:$0xff]
      %v625 = vld [vmem:[#allocation2 + $0x8] sm:$0xff]
      %v626 = vld [vmem:[%s566] sm:$0x1]
      %v627 = vsub.f32 1.0, %v626
      %v628 = vmul.f32 %v627, -1e+09
      %v629 = vld [vmem:[%s569] sm:$0x1]
      %v630 = vld [vmem:[%s572] sm:$0x1]
      %vm631 = vcmask 261120
      %v632 = vsel %vm631, %v624, 0.0
      %633 = vadd.xlane.f32.xlu0 %v632
      %v634 = vpop.xlane.xlu0 %633
      %v635 = vsel %vm631, %v625, 0.0
      %636 = vadd.xlane.f32.xlu0 %v635
      %v637 = vpop.xlane.xlu0 %636
      %v638 = vrcp.pop 32.0
      %v639 = vmul.f32 32.0, %v638
      %v640 = vsub.f32 1.0, %v639
      %v641 = vmul.f32 %v638, %v640
      %v642 = vadd.f32 %v638, %v641
      %vm643 = vweird.f32 %v638
      %v644 = vsel %vm643, %v638, %v642
      %v645 = vmul.f32 %v634, %v644
      %v646 = vmul.f32 %v637, %v644
      %v647 = vsub.f32 %v624, %v645
      %v648 = vsub.f32 %v625, %v646
      %v649 = vmul.f32 %v647, %v647
      %v650 = vmul.f32 %v648, %v648
      %v651 = vsel %vm631, %v649, 0.0
      %652 = vadd.xlane.f32.xlu0 %v651
      %v653 = vpop.xlane.xlu0 %652
      %v654 = vsel %vm631, %v650, 0.0
      %655 = vadd.xlane.f32.xlu0 %v654
      %v656 = vpop.xlane.xlu0 %655
      %v657 = vmul.f32 %v653, %v644
      %v658 = vmul.f32 %v656, %v644
      %v659 = vadd.f32 %v657, 1e-05
      %v660 = vadd.f32 %v658, 1e-05
      %v661 = vrsqrt.pop %v659
      %v662 = vmul.f32 %v661, %v659
      %v663 = vmul.f32 %v662, %v661
      %v664 = vmul.f32 0.5, %v663
      %v665 = vsub.f32 1.5, %v664
      %v666 = vmul.f32 %v661, %v665
      %vm667 = vweird.f32 %v659
      %vm668 = vweird.f32 %v661
      %vm669 = vmor %vm667, %vm668
      %v670 = vsel %vm669, %v661, %v666
      %v671 = vrsqrt.pop %v660
      %v672 = vmul.f32 %v671, %v660
      %v673 = vmul.f32 %v672, %v671
      %v674 = vmul.f32 0.5, %v673
      %v675 = vsub.f32 1.5, %v674
      %v676 = vmul.f32 %v671, %v675
      %vm677 = vweird.f32 %v660
      %vm678 = vweird.f32 %v671
      %vm679 = vmor %vm677, %vm678
      %v680 = vsel %vm679, %v671, %v676
      %v681 = vmul.f32 %v647, %v670
      %v682 = vmul.f32 %v648, %v680
      %v684 = vperm.slane %v629, 0
      %v686 = vmul.f32 %v681, %v684
      %v687 = vmul.f32 %v682, %v684
      %v689 = vperm.slane %v630, 0
      %v691 = vadd.f32 %v686, %v689
      %v692 = vadd.f32 %v687, %v689
      %v693 = vpack.c.bf16 %v692, %v691
      %v694 = vld [vmem:[%s577] sm:$0xf]
      %v695 = vld [vmem:[%s577 + $0x4] sm:$0xf]
      %v696 = vld [vmem:[%s577 + $0x8] sm:$0xf]
      %v697 = vld [vmem:[%s577 + $0xc] sm:$0xf]
      %v702 = vunpack.c.l.b16 %v694
      %v703 = vunpack.c.l.b16 %v695
      %v704 = vunpack.c.l.b16 %v696
      %v705 = vunpack.c.l.b16 %v697
      %v706 = vpack.c.b16 %v703, %v702
      %v707 = vpack.c.b16 %v705, %v704
      %v711 = vsel %vm631, %v693, 0
      %713 = vmatpush.bf16.msra.mxu0 0
      %714 = vmatpush.bf16.msra.mxu0 0
      %715 = vmatpush.bf16.msra.mxu0 0
      %716 = vmatpush.bf16.msra.mxu0 0
      %717 = vmatpush.bf16.msra.mxu0 0
      %718 = vmatpush.bf16.msra.mxu0 0
      %719 = vmatpush.bf16.msra.mxu0 %v707
      %720 = vmatpush.bf16.msra.mxu0 %v706
      %721 = vmatmul.bf16.gmra.mxu0 %v711
      %v722 = vpop.f32.mrf.mxu0
      %v723 = vadd.f32 0.0, %v722
      %v724 = vpop.f32.mrf.mxu0
      %v725 = vadd.f32 0.0, %v724
      %726 = vdwg.mxu0
      %v727 = vpack.c.bf16 %v725, %v723
      %v729 = vperm.slane %v628, 0
      %732 = vrot.lane.b32.xlu0 %v727, 96
      %v733 = vpop.permute.xlu0 %732
      %v735 = vsel %vm631, %v727, 0
      %v738 = vsel %vm631, %v733, 0
      %740 = vmatpush.bf16.xpose.msra.mxu0 0
      %741 = vmatpush.bf16.xpose.msra.mxu0 0
      %742 = vmatpush.bf16.xpose.msra.mxu0 0
      %743 = vmatpush.bf16.xpose.msra.mxu0 0
      %744 = vmatpush.bf16.xpose.msra.mxu0 0
      %745 = vmatpush.bf16.xpose.msra.mxu0 0
      %746 = vmatpush.bf16.xpose.msra.mxu0 0
      %747 = vmatpush.bf16.xpose.msra.mxu0 %v738
      %748 = vmatmul.bf16.gmra.mxu0 %v735
      %v749 = vpop.f32.mrf.mxu0
      %v750 = vadd.f32 %v729, %v749
      %v751 = vpop.f32.mrf.mxu0
      %v752 = vadd.f32 %v729, %v751
      %753 = vdwg.mxu0
      %vm754 = vcmask 130048
      %v755 = vsel %vm754, %v750, -inf
      %756 = vmax.xlane.f32.xlu0 %v755
      %v757 = vpop.xlane.xlu0 %756
      %v758 = vsel %vm754, %v752, -inf
      %759 = vmax.xlane.f32.xlu0 %v758
      %v760 = vpop.xlane.xlu0 %759
      %v761 = vsub.f32 %v750, %v757
      %v762 = vsub.f32 %v752, %v760
      %v763 = vmul.f32 %v761, 1.442695
      %v764 = vpow.pop %v763
      %v765 = vmul.f32 %v762, 1.442695
      %v766 = vpow.pop %v765
      %v767 = vsel %vm754, %v764, 0.0
      %768 = vadd.xlane.f32.xlu0 %v767
      %v769 = vpop.xlane.xlu0 %768
      %v770 = vsel %vm754, %v766, 0.0
      %771 = vadd.xlane.f32.xlu0 %v770
      %v772 = vpop.xlane.xlu0 %771
      %v773 = vrcp.pop %v769
      %v774 = vrcp.pop %v772
      %v775 = vmul.f32 %v764, %v773
      %v776 = vmul.f32 %v766, %v774
      %v777 = vpack.c.bf16 %v776, %v775
      %778 = vrot.lane.b32.xlu0 %v727, 64
      %v779 = vpop.permute.xlu0 %778
      %v782 = vsel %vm754, %v777, 0
      %784 = vmatpush.bf16.msra.mxu0 0
      %785 = vmatpush.bf16.msra.mxu0 0
      %786 = vmatpush.bf16.msra.mxu0 0
      %787 = vmatpush.bf16.msra.mxu0 0
      %788 = vmatpush.bf16.msra.mxu0 0
      %789 = vmatpush.bf16.msra.mxu0 0
      %790 = vmatpush.bf16.msra.mxu0 0
      %791 = vmatpush.bf16.msra.mxu0 %v779
      %792 = vmatmul.bf16.gmra.mxu0 %v782
      %v793 = vpop.f32.mrf.mxu0
      %v794 = vadd.f32 0.0, %v793
      %v795 = vpop.f32.mrf.mxu0
      %v796 = vadd.f32 0.0, %v795
      %797 = vdwg.mxu0
      %v798 = vpack.c.bf16 %v796, %v794
      %v799 = vld [vmem:[%s582] sm:$0xf]
      %v800 = vld [vmem:[%s582 + $0x4] sm:$0xf]
      %v801 = vld [vmem:[%s582 + $0x8] sm:$0xf]
      %v802 = vld [vmem:[%s582 + $0xc] sm:$0xf]
      %v807 = vunpack.c.l.b16 %v799
      %v808 = vunpack.c.l.b16 %v800
      %v809 = vunpack.c.l.b16 %v801
      %v810 = vunpack.c.l.b16 %v802
      %v811 = vpack.c.b16 %v808, %v807
      %v812 = vpack.c.b16 %v810, %v809
      %v816 = vsel %vm631, %v798, 0
      %818 = vmatpush.bf16.msra.mxu0 0
      %819 = vmatpush.bf16.msra.mxu0 0
      %820 = vmatpush.bf16.msra.mxu0 0
      %821 = vmatpush.bf16.msra.mxu0 0
      %822 = vmatpush.bf16.msra.mxu0 0
      %823 = vmatpush.bf16.msra.mxu0 0
      %824 = vmatpush.bf16.msra.mxu0 %v812
      %825 = vmatpush.bf16.msra.mxu0 %v811
      %826 = vmatmul.bf16.gmra.mxu0 %v816
      %v827 = vpop.f32.mrf.mxu0
      %v828 = vadd.f32 0.0, %v827
      %v829 = vpop.f32.mrf.mxu0
      %v830 = vadd.f32 0.0, %v829
      %831 = vdwg.mxu0
      %v832 = vadd.f32 %v624, %v828
      %v833 = vadd.f32 %v625, %v830
      %v834 = vld [vmem:[%s585] sm:$0x1]
      %v835 = vld [vmem:[%s588] sm:$0x1]
      %v836 = vsel %vm631, %v832, 0.0
      %837 = vadd.xlane.f32.xlu0 %v836
      %v838 = vpop.xlane.xlu0 %837
      %v839 = vsel %vm631, %v833, 0.0
      %840 = vadd.xlane.f32.xlu0 %v839
      %v841 = vpop.xlane.xlu0 %840
      %v842 = vmul.f32 %v838, %v644
      %v843 = vmul.f32 %v841, %v644
      %v844 = vsub.f32 %v832, %v842
      %v845 = vsub.f32 %v833, %v843
      %v846 = vmul.f32 %v844, %v844
      %v847 = vmul.f32 %v845, %v845
      %v848 = vsel %vm631, %v846, 0.0
      %849 = vadd.xlane.f32.xlu0 %v848
      %v850 = vpop.xlane.xlu0 %849
      %v851 = vsel %vm631, %v847, 0.0
      %852 = vadd.xlane.f32.xlu0 %v851
      %v853 = vpop.xlane.xlu0 %852
      %v854 = vmul.f32 %v850, %v644
      %v855 = vmul.f32 %v853, %v644
      %v856 = vadd.f32 %v854, 1e-05
      %v857 = vadd.f32 %v855, 1e-05
      %v858 = vrsqrt.pop %v856
      %v859 = vmul.f32 %v858, %v856
      %v860 = vmul.f32 %v859, %v858
      %v861 = vmul.f32 0.5, %v860
      %v862 = vsub.f32 1.5, %v861
      %v863 = vmul.f32 %v858, %v862
      %vm864 = vweird.f32 %v856
      %vm865 = vweird.f32 %v858
      %vm866 = vmor %vm864, %vm865
      %v867 = vsel %vm866, %v858, %v863
      %v868 = vrsqrt.pop %v857
      %v869 = vmul.f32 %v868, %v857
      %v870 = vmul.f32 %v869, %v868
      %v871 = vmul.f32 0.5, %v870
      %v872 = vsub.f32 1.5, %v871
      %v873 = vmul.f32 %v868, %v872
      %vm874 = vweird.f32 %v857
      %vm875 = vweird.f32 %v868
      %vm876 = vmor %vm874, %vm875
      %v877 = vsel %vm876, %v868, %v873
      %v878 = vmul.f32 %v844, %v867
      %v879 = vmul.f32 %v845, %v877
      %v881 = vperm.slane %v834, 0
      %v883 = vmul.f32 %v878, %v881
      %v884 = vmul.f32 %v879, %v881
      %v886 = vperm.slane %v835, 0
      %v888 = vadd.f32 %v883, %v886
      %v889 = vadd.f32 %v884, %v886
      %v890 = vpack.c.bf16 %v889, %v888
      %v891 = vld [vmem:[%s593] sm:$0xf]
      %v892 = vld [vmem:[%s593 + $0x4] sm:$0xf]
      %v893 = vld [vmem:[%s593 + $0x8] sm:$0xf]
      %v894 = vld [vmem:[%s593 + $0xc] sm:$0xf]
      %v895 = vld [vmem:[%s596] sm:$0x1]
      %v897 = vperm.slane %v895, 0
      %v903 = vunpack.c.l.b16 %v891
      %v904 = vunpack.c.l.b16 %v892
      %v905 = vunpack.c.l.b16 %v893
      %v906 = vunpack.c.l.b16 %v894
      %v907 = vpack.c.b16 %v904, %v903
      %v908 = vpack.c.b16 %v906, %v905
      %v912 = vsel %vm631, %v890, 0
      %914 = vmatpush.bf16.msra.mxu0 0
      %915 = vmatpush.bf16.msra.mxu0 0
      %916 = vmatpush.bf16.msra.mxu0 0
      %917 = vmatpush.bf16.msra.mxu0 0
      %918 = vmatpush.bf16.msra.mxu0 0
      %919 = vmatpush.bf16.msra.mxu0 0
      %920 = vmatpush.bf16.msra.mxu0 %v908
      %921 = vmatpush.bf16.msra.mxu0 %v907
      %922 = vmatmul.bf16.gmra.mxu0 %v912
      %v923 = vpop.f32.mrf.mxu0
      %v924 = vadd.f32 %v897, %v923
      %v925 = vpop.f32.mrf.mxu0
      %v926 = vadd.f32 %v897, %v925
      %927 = vdwg.mxu0
      %v928 = vmul.f32 %v924, %v924
      %v929 = vmul.f32 %v926, %v926
      %v930 = vmul.f32 %v924, %v928
      %v931 = vmul.f32 %v926, %v929
      %v932 = vmul.f32 %v930, 0.044715
      %v933 = vmul.f32 %v931, 0.044715
      %v934 = vadd.f32 %v924, %v932
      %v935 = vadd.f32 %v926, %v933
      %v936 = vmul.f32 %v934, 0.7978846
      %v937 = vmul.f32 %v935, 0.7978846
      %v938 = vtanh.pop %v936
      %v939 = vtanh.pop %v937
      %v940 = vadd.f32 %v938, 1.0
      %v941 = vadd.f32 %v939, 1.0
      %v942 = vmul.f32 %v940, 0.5
      %v943 = vmul.f32 %v941, 0.5
      %v944 = vmul.f32 %v924, %v942
      %v945 = vmul.f32 %v926, %v943
      %v946 = vpack.c.bf16 %v945, %v944
      %v947 = vld [vmem:[%s601] sm:$0xf]
      %v948 = vld [vmem:[%s601 + $0x4] sm:$0xf]
      %v949 = vld [vmem:[%s601 + $0x8] sm:$0xf]
      %v950 = vld [vmem:[%s601 + $0xc] sm:$0xf]
      %v951 = vld [vmem:[%s601 + $0x10] sm:$0xf]
      %v952 = vld [vmem:[%s601 + $0x14] sm:$0xf]
      %v953 = vld [vmem:[%s601 + $0x18] sm:$0xf]
      %v954 = vld [vmem:[%s601 + $0x1c] sm:$0xf]
      %v955 = vld [vmem:[%s604] sm:$0x1]
      %v957 = vperm.slane %v955, 0
      %v967 = vunpack.c.l.b16 %v947
      %v968 = vunpack.c.l.b16 %v948
      %v969 = vunpack.c.l.b16 %v949
      %v970 = vunpack.c.l.b16 %v950
      %v971 = vunpack.c.l.b16 %v951
      %v972 = vunpack.c.l.b16 %v952
      %v973 = vunpack.c.l.b16 %v953
      %v974 = vunpack.c.l.b16 %v954
      %v975 = vpack.c.b16 %v968, %v967
      %v976 = vpack.c.b16 %v970, %v969
      %v977 = vpack.c.b16 %v972, %v971
      %v978 = vpack.c.b16 %v974, %v973
      %vm983 = vcmask 523264
      %v985 = vsel %vm983, %v946, 0
      %987 = vmatpush.bf16.msra.mxu0 0
      %988 = vmatpush.bf16.msra.mxu0 0
      %989 = vmatpush.bf16.msra.mxu0 0
      %990 = vmatpush.bf16.msra.mxu0 0
      %991 = vmatpush.bf16.msra.mxu0 %v978
      %992 = vmatpush.bf16.msra.mxu0 %v977
      %993 = vmatpush.bf16.msra.mxu0 %v976
      %994 = vmatpush.bf16.msra.mxu0 %v975
      %995 = vmatmul.bf16.gmra.mxu0 %v985
      %v996 = vpop.f32.mrf.mxu0
      %v997 = vadd.f32 %v957, %v996
      %v998 = vpop.f32.mrf.mxu0
      %v999 = vadd.f32 %v957, %v998
      %1000 = vdwg.mxu0
      %v1001 = vadd.f32 %v832, %v997
      %v1002 = vadd.f32 %v833, %v999
      %1003 = vst.msk [vmem:[#allocation2] sm:$0xff] %vm631, %v1001
      %1004 = vst.msk [vmem:[#allocation2 + $0x8] sm:$0xff] %vm631, %v1002
      %1005 = vst.msk [vmem:[%s613] sm:$0xff] %vm631, %v1001
      %1006 = vst.msk [vmem:[%s613 + $0x8] sm:$0xff] %vm631, %v1002
      %p1007 = scmp.lt.s32.totalorder %s28, 1
      %s1008 = scalar_select %p1007, %s28, 1
      %p1009 = scmp.lt.s32.totalorder %s27, 1
      %s1010 = scalar_select %p1009, %s27, 1
      %s1011 = smul.addr %s1010, 2
      %s1012 = smul.addr %s1008, 4
      %s1013 = sadd.s32 %s1011, %s1012
      %s1014 = smul.addr %s1013, 8
      %s1015 = scalar_lea.vmem %s12, %s1014
      // Predicated region
      $region73: #{prompt_model_forward.1} parent=67 // pred_check
        %p1016 = pneg %p367
      $region74: #{prompt_model_forward.1} parent=67 // pred_check_branch
        %1018 = sbr.rel (%p1016) target = $region76
      $region75: #{prompt_model_forward.1} parent=67 // pred_region
        _
      $region76: #{prompt_model_forward.1} parent=67 // pred_fallthru
        _
    $region68: #{prompt_model_forward.1} parent=5 // pred_fallthru
      _
    %p1019 = scmp.le.s32.totalorder 2, %s18
    // Predicated region
    $region77: #{prompt_model_forward.1} parent=5 // pred_check
      %p1020 = pneg %p1019
    $region78: #{prompt_model_forward.1} parent=5 // pred_check_branch
      %1022 = sbr.rel (%p1020) target = $region80
    $region79: #{prompt_model_forward.1} parent=5 // pred_region
      %s1023 = ssub.s32 %s18, 2
      // Predicated region
      $region81: #{prompt_model_forward.1} parent=79 // pred_check
        %p1024 = pneg %p373
      $region82: #{prompt_model_forward.1} parent=79 // pred_check_branch
        %1026 = sbr.rel (%p1024) target = $region84
      $region83: #{prompt_model_forward.1} parent=79 // pred_region
        %p1027 = scmp.lt.s32.totalorder %s30, 1
        %s1028 = scalar_select %p1027, %s30, 1
        %p1029 = scmp.lt.s32.totalorder %s29, 1
        %s1030 = scalar_select %p1029, %s29, 1
        %s1031 = smul.addr %s1030, 2
        %s1032 = smul.addr %s1028, 4
        %s1033 = sadd.s32 %s1031, %s1032
        %s1034 = smul.addr %s1033, 8
        %s1035 = scalar_lea.vmem %s12, %s1034
      $region84: #{prompt_model_forward.1} parent=79 // pred_fallthru
        _
    $region80: #{prompt_model_forward.1} parent=5 // pred_fallthru
      _
  $region6: #{prompt_model_forward.1} parent=0 // loop_footer
    %s22 = sadd.s32 1, %s18
  $region7: #{prompt_model_forward.1} parent=0 // loop_footer_branch
    %17 = sbr.rel target = $region3
  $region8: #{prompt_model_forward.1} parent=0 // loop_exit
    _

</llo_original>
